<compile_context>
chip_gen: v6e
topology: v6e:2x2x1
jax: 0.10.0
libtpu: 0.0.40
codegen_flags: <defaults>
</compile_context>

<pallas_src>
import numpy as np
import jax
import jax.numpy as jnp
from jax.experimental import pallas as pl
from jax.experimental.pallas import tpu as pltpu


def _round_up(x, m):
    return ((x + m - 1) // m) * m


# ---------------------------------------------------------------------------
# Kernel
# ---------------------------------------------------------------------------
def _att_pool(x, off, cnt, theta_t):
    """Batched ATT_Layer over ragged row-segments of x.

    x       [N, D]      bf16 rows of all graphs for this path
    off/cnt [B_pad, 1]  int32 segment start offset / row count per graph
    theta_t [D, D]      bf16 theta.T (theta @ v == v @ theta_t)
    returns [B_pad, D]  f32 pooled embedding; zeros where cnt == 0, matching
                        the PyTorch torch.zeros((1, dim)) fallback branch.
    All matmuls run native bf16 on the MXU with f32 accumulation.
    """
    b_pad = off.shape[0]
    n = x.shape[0]
    col = jax.lax.broadcasted_iota(jnp.int32, (b_pad, n), 1)
    sel = jnp.logical_and(col >= off, col < off + cnt)           # [B, N] membership
    sel_f = jnp.where(sel, 1.0, 0.0)                             # f32 0/1
    s = sel_f.astype(jnp.bfloat16)                               # 0/1 exact in bf16
    # counts -> f32 exact below 2^24 rows per graph
    inv_cnt = jnp.where(cnt > 0, 1.0, 0.0) / jnp.maximum(cnt.astype(jnp.float32), 1.0)
    # mean_unit = mean(embed_vec, 0) per graph
    means = jnp.dot(s, x, preferred_element_type=jnp.float32) * inv_cnt        # [B, D]
    # common = relu(theta @ mean_unit)
    common = jnp.maximum(
        jnp.dot(means.astype(jnp.bfloat16), theta_t,
                preferred_element_type=jnp.float32), 0.0)                      # [B, D]
    # row scores x[i] . common[graph(i)], computed dense [B, N]; wrong-graph
    # entries are zeroed by sel afterwards.
    # TODO(synk): for large B replace this dense [B,N] matmul with a
    # segment-broadcast of `common` + VPU multiply-reduce over D to remove the
    # Bx FLOP inflation flagged in the perf review.
    scores = jax.lax.dot_general(common.astype(jnp.bfloat16), x,
                                 (((1,), (1,)), ((), ())),
                                 preferred_element_type=jnp.float32)           # [B, N]
    w = (sel_f * jax.nn.sigmoid(scores)).astype(jnp.bfloat16)                  # [B, N]
    # new_embed = mean(embed_vec * sigmoid, 0)
    return jnp.dot(w, x, preferred_element_type=jnp.float32) * inv_cnt         # [B, D]


def _store_padded(out_ref, emb):
    d = emb.shape[1]
    if d == out_ref.shape[1]:
        out_ref[...] = emb
    else:  # node_dim != edge_dim: zero-fill unused lanes (sliced off outside)
        out_ref[:, :d] = emb
        out_ref[:, d:] = jnp.zeros((emb.shape[0], out_ref.shape[1] - d), jnp.float32)


def _graph_emb_kernel(nodes_ref, edges_ref, noff_ref, ncnt_ref,
                      eoff_ref, ecnt_ref, th_obj_ref, th_pred_ref, out_ref):
    path = pl.program_id(0)   # 0 = object/node ATT path, 1 = predicate/edge ATT path

    @pl.when(path == 0)
    def _():
        _store_padded(out_ref, _att_pool(nodes_ref[...], noff_ref[...],
                                         ncnt_ref[...], th_obj_ref[...]))

    @pl.when(path == 1)
    def _():
        _store_padded(out_ref, _att_pool(edges_ref[...], eoff_ref[...],
                                         ecnt_ref[...], th_pred_ref[...]))


def _graph_emb_fusion_kernel(nodes_ref, edges_ref, noff_ref, ncnt_ref,
                             eoff_ref, ecnt_ref, th_obj_ref, th_pred_ref,
                             wf_obj_ref, wf_pred_ref, bf_ref, out_ref):
    path = pl.program_id(0)

    @pl.when(path == 0)
    def _():
        emb = _att_pool(nodes_ref[...], noff_ref[...], ncnt_ref[...], th_obj_ref[...])
        out_ref[...] = (jnp.dot(emb.astype(jnp.bfloat16), wf_obj_ref[...],
                                preferred_element_type=jnp.float32) + bf_ref[...])

    @pl.when(path == 1)
    def _():
        emb = _att_pool(edges_ref[...], eoff_ref[...], ecnt_ref[...], th_pred_ref[...])
        out_ref[...] = jnp.dot(emb.astype(jnp.bfloat16), wf_pred_ref[...],
                               preferred_element_type=jnp.float32)


# ---------------------------------------------------------------------------
# Wrapper
# ---------------------------------------------------------------------------
def _full_spec(arr):
    """Whole-array VMEM block with a constant index map (fetched once)."""
    idx = (0,) * arr.ndim
    return pl.BlockSpec(arr.shape, lambda i, _idx=idx: _idx)


def _nbytes(arr):
    return int(np.prod(arr.shape)) * jnp.dtype(arr.dtype).itemsize


def graph_emb_forward(params, eb_nodes, eb_edges, numb_nodes, numb_edges):
    """Pallas GraphEmb.forward; numb_nodes / numb_edges are Python int lists."""
    node_dim = int(params["theta_obj_t"].shape[0])
    edge_dim = int(params["theta_pred_t"].shape[0])
    b = len(numb_nodes)
    b_pad = _round_up(max(b, 1), 8)          # sublane-aligned batch

    def seg_meta(counts):
        counts = np.asarray(counts, np.int32)
        cnt = np.zeros(b_pad, np.int32)
        off = np.zeros(b_pad, np.int32)
        cnt[:b] = counts
        off[:b] = np.cumsum(counts) - counts              # exclusive prefix sum
        return (jnp.asarray(off).reshape(b_pad, 1),
                jnp.asarray(cnt).reshape(b_pad, 1))

    def prep_rows(x, dim):
        # No zero-padded HBM copy: the in-kernel segment mask already handles
        # every row.  The bf16 cast is the only host-side pass.
        n = int(x.shape[0])
        if n == 0:
            return jnp.zeros((8, dim), jnp.bfloat16)       # dummy rows, all masked out
        return jnp.asarray(x, jnp.bfloat16)

    noff, ncnt = seg_meta(numb_nodes)
    eoff, ecnt = seg_meta(numb_edges)
    nodes = prep_rows(eb_nodes, node_dim)
    edges = prep_rows(eb_edges, edge_dim)
    n_rows, e_rows = int(nodes.shape[0]), int(edges.shape[0])

    has_fusion = "w_fuse_obj_t" in params
    if has_fusion:
        out_dim = int(params["b_fuse"].shape[-1])
        out_last = out_dim
        kernel = _graph_emb_fusion_kernel
        args = (nodes, edges, noff, ncnt, eoff, ecnt,
                params["theta_obj_t"], params["theta_pred_t"],
                params["w_fuse_obj_t"], params["w_fuse_pred_t"], params["b_fuse"])
    else:
        out_dim = node_dim + edge_dim
        out_last = max(node_dim, edge_dim)
        kernel = _graph_emb_kernel
        args = (nodes, edges, noff, ncnt, eoff, ecnt,
                params["theta_obj_t"], params["theta_pred_t"])

    # --- explicit VMEM budget (single-block design; tiled path is a TODO) ---
    in_bytes = sum(_nbytes(a) for a in args)
    out_bytes = 2 * b_pad * out_last * 4
    n_max = max(n_rows, e_rows)
    inter_bytes = (8 * b_pad * n_max * 4                        # [B,N] mask/score temps
                   + 8 * b_pad * max(node_dim, edge_dim, out_last) * 4)
    budget = 2 * (in_bytes + out_bytes) + inter_bytes + (2 << 20)
    if budget > (64 << 20):   # v7x physical VMEM per TensorCore
        # TODO(synk): row-chunked pipelined grid for production sizes.
        raise NotImplementedError("operands exceed single-block VMEM budget")
    vmem_limit = int(max(16 << 20, min(64 << 20, budget)))

    flops = (6 * b_pad * n_rows * node_dim + 2 * b_pad * node_dim * node_dim
             + 6 * b_pad * e_rows * edge_dim + 2 * b_pad * edge_dim * edge_dim)
    if has_fusion:
        flops += 2 * b_pad * (node_dim + edge_dim) * out_dim
    bytes_accessed = in_bytes + out_bytes

    out2 = pl.pallas_call(
        kernel,
        out_shape=jax.ShapeDtypeStruct((2, b_pad, out_last), jnp.float32),
        grid=(2,),                                # program 0: obj path, 1: pred path
        in_specs=[_full_spec(a) for a in args],
        out_specs=pl.BlockSpec((None, b_pad, out_last), lambda i: (i, 0, 0)),
        compiler_params=pltpu.CompilerParams(
            dimension_semantics=("parallel",),    # both v7x TensorCores
            vmem_limit_bytes=vmem_limit),
        cost_estimate=pl.CostEstimate(flops=flops,
                                      transcendentals=b_pad * (n_rows + e_rows),
                                      bytes_accessed=bytes_accessed),
    )(*args)

    if has_fusion:
        geb = out2[0] + out2[1]                   # partial matmuls + bias (tiny XLA add)
    else:
        geb = jnp.concatenate([out2[0, :, :node_dim], out2[1, :, :edge_dim]], axis=1)
    return geb[:b]


# ---------------------------------------------------------------------------
# Parameters (kernel layout pre-folded offline, bf16) and numpy reference
# ---------------------------------------------------------------------------
def init_graph_emb_params(key, node_dim, edge_dim, fusion_dim=None):
    k1, k2, k3, k4 = jax.random.split(key, 4)
    # kaiming_normal_(theta, mode='fan_out', nonlinearity='relu'): std = sqrt(2/fan_out)
    theta_obj = jax.random.normal(k1, (node_dim, node_dim), jnp.float32) * (2.0 / node_dim) ** 0.5
    theta_pred = jax.random.normal(k2, (edge_dim, edge_dim), jnp.float32) * (2.0 / edge_dim) ** 0.5
    params = {
        "theta_obj": theta_obj, "theta_pred": theta_pred,                    # reference (f32)
        "theta_obj_t": theta_obj.T.astype(jnp.bfloat16),                     # kernel (bf16)
        "theta_pred_t": theta_pred.T.astype(jnp.bfloat16),
    }
    if fusion_dim is not None:
        fan_in = node_dim + edge_dim
        bound = 1.0 / float(fan_in) ** 0.5
        w = jax.random.uniform(k3, (fusion_dim, fan_in), jnp.float32, -bound, bound)
        bias = jax.random.uniform(k4, (1, fusion_dim), jnp.float32, -bound, bound)
        params["w_fuse"] = w
        params["b_fuse"] = bias                                              # f32 bias add
        wt = w.T                                                             # [fan_in, fusion_dim]
        params["w_fuse_obj_t"] = wt[:node_dim].astype(jnp.bfloat16)
        params["w_fuse_pred_t"] = wt[node_dim:].astype(jnp.bfloat16)
    return params


def _att_layer_ref_np(x, theta):
    mean_unit = x.mean(axis=0)
    common = np.maximum(theta @ mean_unit, 0.0)
    sig = 1.0 / (1.0 + np.exp(-(x @ common)))
    return (x * sig[:, None]).mean(axis=0)


def graph_emb_reference(params, eb_nodes, eb_edges, numb_nodes, numb_edges):
    """numpy reimplementation of GraphEmb.forward (ground truth for the check)."""
    theta_obj = np.asarray(params["theta_obj"])
    theta_pred = np.asarray(params["theta_pred"])
    node_dim, edge_dim = theta_obj.shape[0], theta_pred.shape[0]
    co = cp = 0
    rows = []
    for idx in range(len(numb_nodes)):
        no = numb_nodes[idx]
        cur_o = eb_nodes[co:co + no] if no > 0 else np.zeros((1, node_dim), np.float32)
        co += no
        ne = numb_edges[idx]
        cur_p = eb_edges[cp:cp + ne] if ne > 0 else np.zeros((1, edge_dim), np.float32)
        cp += ne
        rows.append(np.concatenate([_att_layer_ref_np(cur_o, theta_obj),
                                    _att_layer_ref_np(cur_p, theta_pred)]))
    geb = np.stack(rows).astype(np.float32)
    if "w_fuse" in params:
        geb = geb @ np.asarray(params["w_fuse"]).T + np.asarray(params["b_fuse"])
    return geb


# ---------------------------------------------------------------------------
# Demo
# ---------------------------------------------------------------------------
if __name__ == "__main__":
    NODE_DIM = 128     # small, lane-dense analogue of the 1024-dim defaults
    EDGE_DIM = 128
    FUSION_DIM = 128
    numb_nodes = [5, 0, 7]   # includes an empty graph to exercise the zeros branch
    numb_edges = [4, 3, 0]

    key = jax.random.PRNGKey(0)
    kn, ke, kp0, kp1 = jax.random.split(key, 4)
    eb_nodes = jax.random.normal(kn, (sum(numb_nodes), NODE_DIM), jnp.float32)
    eb_edges = jax.random.normal(ke, (sum(numb_edges), EDGE_DIM), jnp.float32)

    # default GraphEmb (fusion=None) and the fusion-Linear variant
    for fusion_dim, kparams in ((None, kp0), (FUSION_DIM, kp1)):
        params = init_graph_emb_params(kparams, NODE_DIM, EDGE_DIM, fusion_dim)
        geb = graph_emb_forward(params, eb_nodes, eb_edges, numb_nodes, numb_edges)
        jax.block_until_ready(geb)
        out_dim = fusion_dim if fusion_dim is not None else NODE_DIM + EDGE_DIM
        assert geb.shape == (len(numb_nodes), out_dim)
        ref = graph_emb_reference(params, np.asarray(eb_nodes), np.asarray(eb_edges),
                                  numb_nodes, numb_edges)
        err = float(np.max(np.abs(np.asarray(geb, np.float32) - ref)))
        # bf16 operands (f32 accumulation) -> tolerance loosened vs the f32 version
        assert err < 6e-2, f"mismatch vs reference: max abs err {err}"

    print("KERNEL_OK")
</pallas_src>

<mosaic_0001>
module attributes {stable_mosaic.version = 11 : i64} {
  func.func @_graph_emb_kernel(%arg0: i32, %arg1: memref<12x128xbf16, #tpu.memory_space<vmem>>, %arg2: memref<7x128xbf16, #tpu.memory_space<vmem>>, %arg3: memref<8x1xi32, #tpu.memory_space<vmem>>, %arg4: memref<8x1xi32, #tpu.memory_space<vmem>>, %arg5: memref<8x1xi32, #tpu.memory_space<vmem>>, %arg6: memref<8x1xi32, #tpu.memory_space<vmem>>, %arg7: memref<128x128xbf16, #tpu.memory_space<vmem>>, %arg8: memref<128x128xbf16, #tpu.memory_space<vmem>>, %arg9: memref<1x8x128xf32, #tpu.memory_space<vmem>>) attributes {dimension_semantics = [#tpu.dimension_semantics<parallel>], iteration_bounds = array<i64: 2>, scalar_prefetch = 0 : i64, scratch_operands = 0 : i64, tpu.core_type = #tpu.core_type<tc>, window_params = [{pipeline_mode = #tpu.pipeline_mode<synchronous>, transform_indices = @transform_0, window_bounds = array<i64: 12, 128>}, {pipeline_mode = #tpu.pipeline_mode<synchronous>, transform_indices = @transform_1, window_bounds = array<i64: 7, 128>}, {pipeline_mode = #tpu.pipeline_mode<synchronous>, transform_indices = @transform_2, window_bounds = array<i64: 8, 1>}, {pipeline_mode = #tpu.pipeline_mode<synchronous>, transform_indices = @transform_3, window_bounds = array<i64: 8, 1>}, {pipeline_mode = #tpu.pipeline_mode<synchronous>, transform_indices = @transform_4, window_bounds = array<i64: 8, 1>}, {pipeline_mode = #tpu.pipeline_mode<synchronous>, transform_indices = @transform_5, window_bounds = array<i64: 8, 1>}, {pipeline_mode = #tpu.pipeline_mode<synchronous>, transform_indices = @transform_6, window_bounds = array<i64: 128, 128>}, {pipeline_mode = #tpu.pipeline_mode<synchronous>, transform_indices = @transform_7, window_bounds = array<i64: 128, 128>}, {transform_indices = @transform_8, window_bounds = array<i64: 1, 8, 128>}]} {
    %c0_i32 = arith.constant 0 : i32
    %0 = arith.cmpi eq, %arg0, %c0_i32 : i32
    %1 = arith.extui %0 : i1 to i32
    %c0_i32_0 = arith.constant 0 : i32
    %2 = arith.cmpi ne, %1, %c0_i32_0 : i32
    scf.if %2 {
      %c0 = arith.constant 0 : index
      %c0_2 = arith.constant 0 : index
      %6 = vector.load %arg1[%c0, %c0_2] : memref<12x128xbf16, #tpu.memory_space<vmem>>, vector<12x128xbf16>
      %c0_3 = arith.constant 0 : index
      %c0_4 = arith.constant 0 : index
      %7 = vector.load %arg3[%c0_3, %c0_4] : memref<8x1xi32, #tpu.memory_space<vmem>>, vector<8x1xi32>
      %c0_5 = arith.constant 0 : index
      %c0_6 = arith.constant 0 : index
      %8 = vector.load %arg4[%c0_5, %c0_6] : memref<8x1xi32, #tpu.memory_space<vmem>>, vector<8x1xi32>
      %c0_7 = arith.constant 0 : index
      %c0_8 = arith.constant 0 : index
      %9 = vector.load %arg7[%c0_7, %c0_8] : memref<128x128xbf16, #tpu.memory_space<vmem>>, vector<128x128xbf16>
      %10 = tpu.iota {dimensions = array<i32: 1>} : vector<8x12xi32>
      %11 = vector.broadcast %7 : vector<8x1xi32> to vector<8x12xi32>
      %12 = arith.cmpi sge, %10, %11 : vector<8x12xi32>
      %13 = arith.addi %7, %8 : vector<8x1xi32>
      %14 = vector.broadcast %13 : vector<8x1xi32> to vector<8x12xi32>
      %15 = arith.cmpi slt, %10, %14 : vector<8x12xi32>
      %16 = arith.andi %12, %15 : vector<8x12xi1>
      %cst = arith.constant 1.000000e+00 : f32
      %cst_9 = arith.constant 0.000000e+00 : f32
      %17 = vector.broadcast %cst : f32 to vector<8x12xf32>
      %18 = vector.broadcast %cst_9 : f32 to vector<8x12xf32>
      %19 = arith.select %16, %17, %18 : vector<8x12xi1>, vector<8x12xf32>
      %20 = arith.truncf %19 : vector<8x12xf32> to vector<8x12xbf16>
      %c0_i32_10 = arith.constant 0 : i32
      %21 = vector.broadcast %c0_i32_10 : i32 to vector<8x1xi32>
      %22 = arith.cmpi sgt, %8, %21 : vector<8x1xi32>
      %cst_11 = arith.constant 1.000000e+00 : f32
      %cst_12 = arith.constant 0.000000e+00 : f32
      %23 = vector.broadcast %cst_11 : f32 to vector<8x1xf32>
      %24 = vector.broadcast %cst_12 : f32 to vector<8x1xf32>
      %25 = arith.select %22, %23, %24 : vector<8x1xi1>, vector<8x1xf32>
      %26 = arith.sitofp %8 : vector<8x1xi32> to vector<8x1xf32>
      %cst_13 = arith.constant 1.000000e+00 : f32
      %27 = vector.broadcast %cst_13 : f32 to vector<8x1xf32>
      %28 = arith.maximumf %26, %27 : vector<8x1xf32>
      %29 = arith.divf %25, %28 : vector<8x1xf32>
      %cst_14 = arith.constant dense<0.000000e+00> : vector<8x128xf32>
      %30 = tpu.matmul %20, %6, %cst_14 {dimension_numbers = #tpu.dot_dimension_numbers<[1], [0], [0], [1], [0, 0, 1, 1], [], []>} : vector<8x12xbf16>, vector<12x128xbf16>, vector<8x128xf32> -> vector<8x128xf32>
      %31 = vector.broadcast %29 : vector<8x1xf32> to vector<8x128xf32>
      %32 = arith.mulf %30, %31 : vector<8x128xf32>
      %33 = arith.truncf %32 : vector<8x128xf32> to vector<8x128xbf16>
      %cst_15 = arith.constant dense<0.000000e+00> : vector<8x128xf32>
      %34 = tpu.matmul %33, %9, %cst_15 {dimension_numbers = #tpu.dot_dimension_numbers<[1], [0], [0], [1], [0, 0, 1, 1], [], []>} : vector<8x128xbf16>, vector<128x128xbf16>, vector<8x128xf32> -> vector<8x128xf32>
      %cst_16 = arith.constant 0.000000e+00 : f32
      %35 = vector.broadcast %cst_16 : f32 to vector<8x128xf32>
      %36 = arith.maximumf %34, %35 : vector<8x128xf32>
      %37 = arith.truncf %36 : vector<8x128xf32> to vector<8x128xbf16>
      %cst_17 = arith.constant dense<0.000000e+00> : vector<8x12xf32>
      %38 = tpu.matmul %37, %6, %cst_17 {dimension_numbers = #tpu.dot_dimension_numbers<[1], [1], [0], [0], [0, 0, 1, 0], [], []>} : vector<8x128xbf16>, vector<12x128xbf16>, vector<8x12xf32> -> vector<8x12xf32>
      %39 = arith.negf %38 : vector<8x12xf32>
      %40 = math.exp %39 : vector<8x12xf32>
      %cst_18 = arith.constant 1.000000e+00 : f32
      %41 = vector.broadcast %cst_18 : f32 to vector<8x12xf32>
      %42 = arith.addf %41, %40 : vector<8x12xf32>
      %43 = arith.divf %41, %42 : vector<8x12xf32>
      %44 = arith.mulf %19, %43 : vector<8x12xf32>
      %45 = arith.truncf %44 : vector<8x12xf32> to vector<8x12xbf16>
      %cst_19 = arith.constant dense<0.000000e+00> : vector<8x128xf32>
      %46 = tpu.matmul %45, %6, %cst_19 {dimension_numbers = #tpu.dot_dimension_numbers<[1], [0], [0], [1], [0, 0, 1, 1], [], []>} : vector<8x12xbf16>, vector<12x128xbf16>, vector<8x128xf32> -> vector<8x128xf32>
      %47 = vector.broadcast %29 : vector<8x1xf32> to vector<8x128xf32>
      %48 = arith.mulf %46, %47 : vector<8x128xf32>
      %c0_20 = arith.constant 0 : index
      %c0_21 = arith.constant 0 : index
      %c0_22 = arith.constant 0 : index
      %49 = vector.load %arg9[%c0_20, %c0_21, %c0_22] : memref<1x8x128xf32, #tpu.memory_space<vmem>>, vector<1x8x128xf32>
      %50 = vector.shape_cast %49 : vector<1x8x128xf32> to vector<8x128xf32>
      %51 = vector.shape_cast %48 : vector<8x128xf32> to vector<1x8x128xf32>
      tpu.vector_store %arg9[%c0_20, %c0_21, %c0_22], %51 {strides = array<i32>} : memref<1x8x128xf32, #tpu.memory_space<vmem>>, vector<1x8x128xf32>,
    } else {
    }
    %c1_i32 = arith.constant 1 : i32
    %3 = arith.cmpi eq, %arg0, %c1_i32 : i32
    %4 = arith.extui %3 : i1 to i32
    %c0_i32_1 = arith.constant 0 : i32
    %5 = arith.cmpi ne, %4, %c0_i32_1 : i32
    scf.if %5 {
      %c0 = arith.constant 0 : index
      %c0_2 = arith.constant 0 : index
      %6 = vector.load %arg2[%c0, %c0_2] : memref<7x128xbf16, #tpu.memory_space<vmem>>, vector<7x128xbf16>
      %c0_3 = arith.constant 0 : index
      %c0_4 = arith.constant 0 : index
      %7 = vector.load %arg5[%c0_3, %c0_4] : memref<8x1xi32, #tpu.memory_space<vmem>>, vector<8x1xi32>
      %c0_5 = arith.constant 0 : index
      %c0_6 = arith.constant 0 : index
      %8 = vector.load %arg6[%c0_5, %c0_6] : memref<8x1xi32, #tpu.memory_space<vmem>>, vector<8x1xi32>
      %c0_7 = arith.constant 0 : index
      %c0_8 = arith.constant 0 : index
      %9 = vector.load %arg8[%c0_7, %c0_8] : memref<128x128xbf16, #tpu.memory_space<vmem>>, vector<128x128xbf16>
      %10 = tpu.iota {dimensions = array<i32: 1>} : vector<8x7xi32>
      %11 = vector.broadcast %7 : vector<8x1xi32> to vector<8x7xi32>
      %12 = arith.cmpi sge, %10, %11 : vector<8x7xi32>
      %13 = arith.addi %7, %8 : vector<8x1xi32>
      %14 = vector.broadcast %13 : vector<8x1xi32> to vector<8x7xi32>
      %15 = arith.cmpi slt, %10, %14 : vector<8x7xi32>
      %16 = arith.andi %12, %15 : vector<8x7xi1>
      %cst = arith.constant 1.000000e+00 : f32
      %cst_9 = arith.constant 0.000000e+00 : f32
      %17 = vector.broadcast %cst : f32 to vector<8x7xf32>
      %18 = vector.broadcast %cst_9 : f32 to vector<8x7xf32>
      %19 = arith.select %16, %17, %18 : vector<8x7xi1>, vector<8x7xf32>
      %20 = arith.truncf %19 : vector<8x7xf32> to vector<8x7xbf16>
      %c0_i32_10 = arith.constant 0 : i32
      %21 = vector.broadcast %c0_i32_10 : i32 to vector<8x1xi32>
      %22 = arith.cmpi sgt, %8, %21 : vector<8x1xi32>
      %cst_11 = arith.constant 1.000000e+00 : f32
      %cst_12 = arith.constant 0.000000e+00 : f32
      %23 = vector.broadcast %cst_11 : f32 to vector<8x1xf32>
      %24 = vector.broadcast %cst_12 : f32 to vector<8x1xf32>
      %25 = arith.select %22, %23, %24 : vector<8x1xi1>, vector<8x1xf32>
      %26 = arith.sitofp %8 : vector<8x1xi32> to vector<8x1xf32>
      %cst_13 = arith.constant 1.000000e+00 : f32
      %27 = vector.broadcast %cst_13 : f32 to vector<8x1xf32>
      %28 = arith.maximumf %26, %27 : vector<8x1xf32>
      %29 = arith.divf %25, %28 : vector<8x1xf32>
      %cst_14 = arith.constant dense<0.000000e+00> : vector<8x128xf32>
      %30 = tpu.matmul %20, %6, %cst_14 {dimension_numbers = #tpu.dot_dimension_numbers<[1], [0], [0], [1], [0, 0, 1, 1], [], []>} : vector<8x7xbf16>, vector<7x128xbf16>, vector<8x128xf32> -> vector<8x128xf32>
      %31 = vector.broadcast %29 : vector<8x1xf32> to vector<8x128xf32>
      %32 = arith.mulf %30, %31 : vector<8x128xf32>
      %33 = arith.truncf %32 : vector<8x128xf32> to vector<8x128xbf16>
      %cst_15 = arith.constant dense<0.000000e+00> : vector<8x128xf32>
      %34 = tpu.matmul %33, %9, %cst_15 {dimension_numbers = #tpu.dot_dimension_numbers<[1], [0], [0], [1], [0, 0, 1, 1], [], []>} : vector<8x128xbf16>, vector<128x128xbf16>, vector<8x128xf32> -> vector<8x128xf32>
      %cst_16 = arith.constant 0.000000e+00 : f32
      %35 = vector.broadcast %cst_16 : f32 to vector<8x128xf32>
      %36 = arith.maximumf %34, %35 : vector<8x128xf32>
      %37 = arith.truncf %36 : vector<8x128xf32> to vector<8x128xbf16>
      %cst_17 = arith.constant dense<0.000000e+00> : vector<8x7xf32>
      %38 = tpu.matmul %37, %6, %cst_17 {dimension_numbers = #tpu.dot_dimension_numbers<[1], [1], [0], [0], [0, 0, 1, 0], [], []>} : vector<8x128xbf16>, vector<7x128xbf16>, vector<8x7xf32> -> vector<8x7xf32>
      %39 = arith.negf %38 : vector<8x7xf32>
      %40 = math.exp %39 : vector<8x7xf32>
      %cst_18 = arith.constant 1.000000e+00 : f32
      %41 = vector.broadcast %cst_18 : f32 to vector<8x7xf32>
      %42 = arith.addf %41, %40 : vector<8x7xf32>
      %43 = arith.divf %41, %42 : vector<8x7xf32>
      %44 = arith.mulf %19, %43 : vector<8x7xf32>
      %45 = arith.truncf %44 : vector<8x7xf32> to vector<8x7xbf16>
      %cst_19 = arith.constant dense<0.000000e+00> : vector<8x128xf32>
      %46 = tpu.matmul %45, %6, %cst_19 {dimension_numbers = #tpu.dot_dimension_numbers<[1], [0], [0], [1], [0, 0, 1, 1], [], []>} : vector<8x7xbf16>, vector<7x128xbf16>, vector<8x128xf32> -> vector<8x128xf32>
      %47 = vector.broadcast %29 : vector<8x1xf32> to vector<8x128xf32>
      %48 = arith.mulf %46, %47 : vector<8x128xf32>
      %c0_20 = arith.constant 0 : index
      %c0_21 = arith.constant 0 : index
      %c0_22 = arith.constant 0 : index
      %49 = vector.load %arg9[%c0_20, %c0_21, %c0_22] : memref<1x8x128xf32, #tpu.memory_space<vmem>>, vector<1x8x128xf32>
      %50 = vector.shape_cast %49 : vector<1x8x128xf32> to vector<8x128xf32>
      %51 = vector.shape_cast %48 : vector<8x128xf32> to vector<1x8x128xf32>
      tpu.vector_store %arg9[%c0_20, %c0_21, %c0_22], %51 {strides = array<i32>} : memref<1x8x128xf32, #tpu.memory_space<vmem>>, vector<1x8x128xf32>,
    } else {
    }
    return
  }
  func.func @transform_0(%arg0: i32) -> (i32, i32) {
    %c0_i32 = arith.constant 0 : i32
    %c0_i32_0 = arith.constant 0 : i32
    %c0_i32_1 = arith.constant 0 : i32
    return %c0_i32, %c0_i32_0 : i32, i32
  }
  func.func @transform_1(%arg0: i32) -> (i32, i32) {
    %c0_i32 = arith.constant 0 : i32
    %c0_i32_0 = arith.constant 0 : i32
    %c0_i32_1 = arith.constant 0 : i32
    return %c0_i32, %c0_i32_0 : i32, i32
  }
  func.func @transform_2(%arg0: i32) -> (i32, i32) {
    %c0_i32 = arith.constant 0 : i32
    %c0_i32_0 = arith.constant 0 : i32
    %c0_i32_1 = arith.constant 0 : i32
    return %c0_i32, %c0_i32_0 : i32, i32
  }
  func.func @transform_3(%arg0: i32) -> (i32, i32) {
    %c0_i32 = arith.constant 0 : i32
    %c0_i32_0 = arith.constant 0 : i32
    %c0_i32_1 = arith.constant 0 : i32
    return %c0_i32, %c0_i32_0 : i32, i32
  }
  func.func @transform_4(%arg0: i32) -> (i32, i32) {
    %c0_i32 = arith.constant 0 : i32
    %c0_i32_0 = arith.constant 0 : i32
    %c0_i32_1 = arith.constant 0 : i32
    return %c0_i32, %c0_i32_0 : i32, i32
  }
  func.func @transform_5(%arg0: i32) -> (i32, i32) {
    %c0_i32 = arith.constant 0 : i32
    %c0_i32_0 = arith.constant 0 : i32
    %c0_i32_1 = arith.constant 0 : i32
    return %c0_i32, %c0_i32_0 : i32, i32
  }
  func.func @transform_6(%arg0: i32) -> (i32, i32) {
    %c0_i32 = arith.constant 0 : i32
    %c0_i32_0 = arith.constant 0 : i32
    %c0_i32_1 = arith.constant 0 : i32
    return %c0_i32, %c0_i32_0 : i32, i32
  }
  func.func @transform_7(%arg0: i32) -> (i32, i32) {
    %c0_i32 = arith.constant 0 : i32
    %c0_i32_0 = arith.constant 0 : i32
    %c0_i32_1 = arith.constant 0 : i32
    return %c0_i32, %c0_i32_0 : i32, i32
  }
  func.func @transform_8(%arg0: i32) -> (i32, i32, i32) {
    %c0_i32 = arith.constant 0 : i32
    %c0_i32_0 = arith.constant 0 : i32
    %c0_i32_1 = arith.constant 0 : i32
    return %arg0, %c0_i32, %c0_i32_0 : i32, i32, i32
  }
}

</mosaic_0001>

<llo_original>
// kernel: tpu_custom_call.1
$region0: #{tpu_custom_call.1}
  #allocation0 [shape = 'u32[]', space=smem, size = 0x4, offset = 0x4, fixed_abs, tag = 'smem constant byte address 0x4 - core index']
  #allocation1 [shape = 'u32[144,128]{1,0:T(1,128)}', space=vmem, size = 0x12000, scoped, tag = 'internal scratch']
  %s0 = inlined_call_operand.vmem [shape: bf16[12,128], index: 0, kind: input, shape index: {}]
  %s1 = inlined_call_operand.vmem [shape: bf16[7,128], index: 1, kind: input, shape index: {}]
  %s2 = inlined_call_operand.vmem [shape: s32[8,1], index: 2, kind: input, shape index: {}]
  %s3 = inlined_call_operand.vmem [shape: s32[8,1], index: 3, kind: input, shape index: {}]
  %s4 = inlined_call_operand.vmem [shape: s32[8,1], index: 4, kind: input, shape index: {}]
  %s5 = inlined_call_operand.vmem [shape: s32[8,1], index: 5, kind: input, shape index: {}]
  %s6 = inlined_call_operand.hbm [shape: bf16[128,128], index: 6, kind: input, shape index: {}]
  %s7 = inlined_call_operand.hbm [shape: bf16[128,128], index: 7, kind: input, shape index: {}]
  %s8 = inlined_call_operand.hbm [shape: f32[2,8,128], index: 8, kind: output, shape index: {}]
  %s9 = sld [smem:[#allocation0]]
  $region81: #{tpu_custom_call.1} parent=0
    _
  %s11 = ssub.s32 1, %s9
  %s12 = scalar_select 0, %s11, %s9
  $region1: #{tpu_custom_call.1} parent=0
    #allocation2 [shape = 'u8[32768]{0}', space=vmem, size = 0x8000, scoped, tag = 'input window, operand 6, single buffered']
    #allocation3 [shape = 's32[2]{0}', space=sflag, size = 0x8, scoped, tag = 'scoped memory for tpu_custom_call.1']
    #allocation4 [shape = 's32[2]{0}', space=sflag, size = 0x8, scoped, tag = 'scoped memory for tpu_custom_call.1']
    #allocation5 [shape = 'u8[32768]{0}', space=vmem, size = 0x8000, scoped, tag = 'input window, operand 7, single buffered']
    #allocation6 [shape = 's32[1]{0}', space=sflag, size = 0x4, scoped, tag = 'scoped memory for tpu_custom_call.1']
    #allocation7 [shape = 'u8[8192]{0}', space=vmem, size = 0x2000, scoped, tag = 'output window, operand 0']
    %13 = vsyncpa [#allocation3], 0
    %14 = vsyncpa [#allocation6], 0
    %15 = vsyncpa [#allocation4], 0
    %s16 = scalar_lea.sflag [#allocation4], 1
    %17 = vsyncpa %s16, 0
    loop: start=0, step=1, limit=4
    $region2: #{tpu_custom_call.1} parent=1 // loop_pre_header
      _
    $region3: #{tpu_custom_call.1} parent=1 // loop_header
      %s19 = sphi 0, %s23
      %p20 = scmp.ge.s32.totalorder %s19, 4
      %s27 = sphi 0, %s27
      %s29 = sphi 0, %s27
      %s30 = sphi 0, %s29
      %s44 = sphi 0, %s30
      %s48 = sphi 0, %s48
      %s50 = sphi 0, %s48
      %s51 = sphi 0, %s50
      %s65 = sphi 0, %s51
      %s69 = sphi 0, %s69
      %s71 = sphi 0, %s69
      %s72 = sphi 0, %s71
      %s86 = sphi 0, %s72
      %s90 = sphi 0, %s90
      %s92 = sphi 0, %s90
      %s93 = sphi 0, %s92
      %s107 = sphi 0, %s93
      %s111 = sphi 0, %s111
      %s113 = sphi 0, %s111
      %s114 = sphi 0, %s113
      %s128 = sphi 0, %s114
      %s132 = sphi 0, %s132
      %s134 = sphi 0, %s132
      %s135 = sphi 0, %s134
      %s149 = sphi 0, %s135
      %s153 = sphi 0, %s153
      %s155 = sphi 0, %s153
      %s156 = sphi 0, %s155
      %s170 = sphi 0, %s156
      %s174 = sphi 0, %s174
      %s176 = sphi 0, %s174
      %s177 = sphi 0, %s176
      %s191 = sphi 0, %s177
      %s197 = sphi 0, %s199
      %s200 = sphi 0, %s197
      %s201 = sphi 0, %s200
      %s217 = sphi 0, %s201
    $region4: #{tpu_custom_call.1} parent=1 // loop_header_branch
      %22 = sbr.rel (%p20) target = $region8
    $region5: #{tpu_custom_call.1} parent=1 // loop_body
      %s24 = ssub.s32 %s19, 1
      %s25 = ssub.s32 %s19, 2
      %s26 = sadd.s32 %s19, 1
      %s28 = sadd.s32 %s27, 1
      %p31 = scmp.eq.s32.totalorder %s19, 1
      %p32 = scmp.ne.s32.totalorder %s27, %s29
      %p33 = scmp.eq.s32.totalorder %s19, 0
      %p34 = por %p32, %p33
      %p35 = scmp.ne.s32.totalorder %s27, %s29
      %p36 = scmp.eq.s32.totalorder %s24, 1
      %p37 = por %p35, %p36
      %p38 = scmp.ne.s32.totalorder %s29, %s30
      %p39 = scmp.eq.s32.totalorder %s24, 0
      %p40 = por %p38, %p39
      %p41 = scmp.ne.s32.totalorder %s29, %s30
      %p42 = scmp.eq.s32.totalorder %s25, 1
      %p43 = por %p41, %p42
      %p45 = scmp.ne.s32.totalorder %s30, %s44
      %p46 = scmp.eq.s32.totalorder %s25, 0
      %p47 = por %p45, %p46
      %s49 = sadd.s32 %s48, 1
      %p52 = scmp.eq.s32.totalorder %s19, 1
      %p53 = scmp.ne.s32.totalorder %s48, %s50
      %p54 = scmp.eq.s32.totalorder %s19, 0
      %p55 = por %p53, %p54
      %p56 = scmp.ne.s32.totalorder %s48, %s50
      %p57 = scmp.eq.s32.totalorder %s24, 1
      %p58 = por %p56, %p57
      %p59 = scmp.ne.s32.totalorder %s50, %s51
      %p60 = scmp.eq.s32.totalorder %s24, 0
      %p61 = por %p59, %p60
      %p62 = scmp.ne.s32.totalorder %s50, %s51
      %p63 = scmp.eq.s32.totalorder %s25, 1
      %p64 = por %p62, %p63
      %p66 = scmp.ne.s32.totalorder %s51, %s65
      %p67 = scmp.eq.s32.totalorder %s25, 0
      %p68 = por %p66, %p67
      %s70 = sadd.s32 %s69, 1
      %p73 = scmp.eq.s32.totalorder %s19, 1
      %p74 = scmp.ne.s32.totalorder %s69, %s71
      %p75 = scmp.eq.s32.totalorder %s19, 0
      %p76 = por %p74, %p75
      %p77 = scmp.ne.s32.totalorder %s69, %s71
      %p78 = scmp.eq.s32.totalorder %s24, 1
      %p79 = por %p77, %p78
      %p80 = scmp.ne.s32.totalorder %s71, %s72
      %p81 = scmp.eq.s32.totalorder %s24, 0
      %p82 = por %p80, %p81
      %p83 = scmp.ne.s32.totalorder %s71, %s72
      %p84 = scmp.eq.s32.totalorder %s25, 1
      %p85 = por %p83, %p84
      %p87 = scmp.ne.s32.totalorder %s72, %s86
      %p88 = scmp.eq.s32.totalorder %s25, 0
      %p89 = por %p87, %p88
      %s91 = sadd.s32 %s90, 1
      %p94 = scmp.eq.s32.totalorder %s19, 1
      %p95 = scmp.ne.s32.totalorder %s90, %s92
      %p96 = scmp.eq.s32.totalorder %s19, 0
      %p97 = por %p95, %p96
      %p98 = scmp.ne.s32.totalorder %s90, %s92
      %p99 = scmp.eq.s32.totalorder %s24, 1
      %p100 = por %p98, %p99
      %p101 = scmp.ne.s32.totalorder %s92, %s93
      %p102 = scmp.eq.s32.totalorder %s24, 0
      %p103 = por %p101, %p102
      %p104 = scmp.ne.s32.totalorder %s92, %s93
      %p105 = scmp.eq.s32.totalorder %s25, 1
      %p106 = por %p104, %p105
      %p108 = scmp.ne.s32.totalorder %s93, %s107
      %p109 = scmp.eq.s32.totalorder %s25, 0
      %p110 = por %p108, %p109
      %s112 = sadd.s32 %s111, 1
      %p115 = scmp.eq.s32.totalorder %s19, 1
      %p116 = scmp.ne.s32.totalorder %s111, %s113
      %p117 = scmp.eq.s32.totalorder %s19, 0
      %p118 = por %p116, %p117
      %p119 = scmp.ne.s32.totalorder %s111, %s113
      %p120 = scmp.eq.s32.totalorder %s24, 1
      %p121 = por %p119, %p120
      %p122 = scmp.ne.s32.totalorder %s113, %s114
      %p123 = scmp.eq.s32.totalorder %s24, 0
      %p124 = por %p122, %p123
      %p125 = scmp.ne.s32.totalorder %s113, %s114
      %p126 = scmp.eq.s32.totalorder %s25, 1
      %p127 = por %p125, %p126
      %p129 = scmp.ne.s32.totalorder %s114, %s128
      %p130 = scmp.eq.s32.totalorder %s25, 0
      %p131 = por %p129, %p130
      %s133 = sadd.s32 %s132, 1
      %p136 = scmp.eq.s32.totalorder %s19, 1
      %p137 = scmp.ne.s32.totalorder %s132, %s134
      %p138 = scmp.eq.s32.totalorder %s19, 0
      %p139 = por %p137, %p138
      %p140 = scmp.ne.s32.totalorder %s132, %s134
      %p141 = scmp.eq.s32.totalorder %s24, 1
      %p142 = por %p140, %p141
      %p143 = scmp.ne.s32.totalorder %s134, %s135
      %p144 = scmp.eq.s32.totalorder %s24, 0
      %p145 = por %p143, %p144
      %p146 = scmp.ne.s32.totalorder %s134, %s135
      %p147 = scmp.eq.s32.totalorder %s25, 1
      %p148 = por %p146, %p147
      %p150 = scmp.ne.s32.totalorder %s135, %s149
      %p151 = scmp.eq.s32.totalorder %s25, 0
      %p152 = por %p150, %p151
      %s154 = sadd.s32 %s153, 1
      %p157 = scmp.eq.s32.totalorder %s19, 1
      %p158 = scmp.ne.s32.totalorder %s153, %s155
      %p159 = scmp.eq.s32.totalorder %s19, 0
      %p160 = por %p158, %p159
      %p161 = scmp.ne.s32.totalorder %s153, %s155
      %p162 = scmp.eq.s32.totalorder %s24, 1
      %p163 = por %p161, %p162
      %p164 = scmp.ne.s32.totalorder %s155, %s156
      %p165 = scmp.eq.s32.totalorder %s24, 0
      %p166 = por %p164, %p165
      %p167 = scmp.ne.s32.totalorder %s155, %s156
      %p168 = scmp.eq.s32.totalorder %s25, 1
      %p169 = por %p167, %p168
      %p171 = scmp.ne.s32.totalorder %s156, %s170
      %p172 = scmp.eq.s32.totalorder %s25, 0
      %p173 = por %p171, %p172
      %s175 = sadd.s32 %s174, 1
      %p178 = scmp.eq.s32.totalorder %s19, 1
      %p179 = scmp.ne.s32.totalorder %s174, %s176
      %p180 = scmp.eq.s32.totalorder %s19, 0
      %p181 = por %p179, %p180
      %p182 = scmp.ne.s32.totalorder %s174, %s176
      %p183 = scmp.eq.s32.totalorder %s24, 1
      %p184 = por %p182, %p183
      %p185 = scmp.ne.s32.totalorder %s176, %s177
      %p186 = scmp.eq.s32.totalorder %s24, 0
      %p187 = por %p185, %p186
      %p188 = scmp.ne.s32.totalorder %s176, %s177
      %p189 = scmp.eq.s32.totalorder %s25, 1
      %p190 = por %p188, %p189
      %p192 = scmp.ne.s32.totalorder %s177, %s191
      %p193 = scmp.eq.s32.totalorder %s25, 0
      %p194 = por %p192, %p193
      %s195 = ssub.s32 %s19, %s26
      %p196 = scmp.eq.s32.totalorder %s195, 0
      %s198 = sadd.s32 %s197, 1
      %s199 = scalar_select %p196, %s197, %s198
      %p202 = pneg %p196
      %p203 = scmp.eq.s32.totalorder %s19, 1
      %p204 = por %p202, %p203
      %p205 = scmp.ne.s32.totalorder %s197, %s200
      %p206 = scmp.eq.s32.totalorder %s19, 0
      %p207 = por %p205, %p206
      %p208 = scmp.ne.s32.totalorder %s197, %s200
      %p209 = scmp.eq.s32.totalorder %s24, 1
      %p210 = por %p208, %p209
      %p211 = scmp.ne.s32.totalorder %s200, %s201
      %p212 = scmp.eq.s32.totalorder %s24, 0
      %p213 = por %p211, %p212
      %p214 = scmp.ne.s32.totalorder %s200, %s201
      %p215 = scmp.eq.s32.totalorder %s25, 1
      %p216 = por %p214, %p215
      %p218 = scmp.ne.s32.totalorder %s201, %s217
      %p219 = scmp.eq.s32.totalorder %s25, 0
      %p220 = por %p218, %p219
      %p221 = scmp.le.s32.totalorder 1, %s19
      %p222 = scmp.lt.s32.totalorder %s19, 3
      %p223 = pnand %p221, %p222
      %p224 = pneg %p223
      // Predicated region
      $region9: #{tpu_custom_call.1} parent=5 // pred_check
        _
      $region10: #{tpu_custom_call.1} parent=5 // pred_check_branch
        %226 = sbr.rel (%p223) target = $region12
      $region11: #{tpu_custom_call.1} parent=5 // pred_region
        %s227 = ssub.s32 %s19, 1
        // Predicated region
        $region13: #{tpu_custom_call.1} parent=11 // pred_check
          %p228 = pneg %p40
        $region14: #{tpu_custom_call.1} parent=11 // pred_check_branch
          %230 = sbr.rel (%p228) target = $region16
        $region15: #{tpu_custom_call.1} parent=11 // pred_region
          _
        $region16: #{tpu_custom_call.1} parent=11 // pred_fallthru
          _
        // Predicated region
        $region17: #{tpu_custom_call.1} parent=11 // pred_check
          %p231 = pneg %p61
        $region18: #{tpu_custom_call.1} parent=11 // pred_check_branch
          %233 = sbr.rel (%p231) target = $region20
        $region19: #{tpu_custom_call.1} parent=11 // pred_region
          _
        $region20: #{tpu_custom_call.1} parent=11 // pred_fallthru
          _
        // Predicated region
        $region21: #{tpu_custom_call.1} parent=11 // pred_check
          %p234 = pneg %p82
        $region22: #{tpu_custom_call.1} parent=11 // pred_check_branch
          %236 = sbr.rel (%p234) target = $region24
        $region23: #{tpu_custom_call.1} parent=11 // pred_region
          _
        $region24: #{tpu_custom_call.1} parent=11 // pred_fallthru
          _
        // Predicated region
        $region25: #{tpu_custom_call.1} parent=11 // pred_check
          %p237 = pneg %p103
        $region26: #{tpu_custom_call.1} parent=11 // pred_check_branch
          %239 = sbr.rel (%p237) target = $region28
        $region27: #{tpu_custom_call.1} parent=11 // pred_region
          _
        $region28: #{tpu_custom_call.1} parent=11 // pred_fallthru
          _
        // Predicated region
        $region29: #{tpu_custom_call.1} parent=11 // pred_check
          %p240 = pneg %p124
        $region30: #{tpu_custom_call.1} parent=11 // pred_check_branch
          %242 = sbr.rel (%p240) target = $region32
        $region31: #{tpu_custom_call.1} parent=11 // pred_region
          _
        $region32: #{tpu_custom_call.1} parent=11 // pred_fallthru
          _
        // Predicated region
        $region33: #{tpu_custom_call.1} parent=11 // pred_check
          %p243 = pneg %p145
        $region34: #{tpu_custom_call.1} parent=11 // pred_check_branch
          %245 = sbr.rel (%p243) target = $region36
        $region35: #{tpu_custom_call.1} parent=11 // pred_region
          _
        $region36: #{tpu_custom_call.1} parent=11 // pred_fallthru
          _
        // Predicated region
        $region37: #{tpu_custom_call.1} parent=11 // pred_check
          %p246 = pneg %p166
        $region38: #{tpu_custom_call.1} parent=11 // pred_check_branch
          %248 = sbr.rel (%p246) target = $region40
        $region39: #{tpu_custom_call.1} parent=11 // pred_region
          %s250 = ssub.s32 1024, 1024
          %251 = vsyncadd [#allocation3], %s250
          %s252 = sshll.u32 [#allocation2], 4
          %s253 = int_to_ptr.vmem [resolvable:$true] %s252
          %258 = dma.hbm_to_vmem [thread:$0]  %s6, 1024, %s253, [#allocation3], 64, 64, 4
        $region40: #{tpu_custom_call.1} parent=11 // pred_fallthru
          _
        // Predicated region
        $region41: #{tpu_custom_call.1} parent=11 // pred_check
          %p259 = pneg %p187
        $region42: #{tpu_custom_call.1} parent=11 // pred_check_branch
          %261 = sbr.rel (%p259) target = $region44
        $region43: #{tpu_custom_call.1} parent=11 // pred_region
          %s263 = ssub.s32 1024, 1024
          %264 = vsyncadd [#allocation6], %s263
          %s265 = sshll.u32 [#allocation5], 4
          %s266 = int_to_ptr.vmem [resolvable:$true] %s265
          %271 = dma.hbm_to_vmem [thread:$0]  %s7, 1024, %s266, [#allocation6], 64, 64, 4
        $region44: #{tpu_custom_call.1} parent=11 // pred_fallthru
          _
      $region12: #{tpu_custom_call.1} parent=5 // pred_fallthru
        _
      %p272 = scmp.lt.s32.totalorder %s19, 2
      // Predicated region
      $region45: #{tpu_custom_call.1} parent=5 // pred_check
        %p273 = pneg %p272
      $region46: #{tpu_custom_call.1} parent=5 // pred_check_branch
        %275 = sbr.rel (%p273) target = $region48
      $region47: #{tpu_custom_call.1} parent=5 // pred_region
        _
      $region48: #{tpu_custom_call.1} parent=5 // pred_fallthru
        _
      %p276 = scmp.le.s32.totalorder 1, %s19
      %p277 = scmp.lt.s32.totalorder %s19, 3
      %p278 = pnand %p276, %p277
      %p279 = pneg %p278
      // Predicated region
      $region49: #{tpu_custom_call.1} parent=5 // pred_check
        _
      $region50: #{tpu_custom_call.1} parent=5 // pred_check_branch
        %281 = sbr.rel (%p278) target = $region52
      $region51: #{tpu_custom_call.1} parent=5 // pred_region
        %s282 = ssub.s32 %s19, 1
        // Predicated region
        $region53: #{tpu_custom_call.1} parent=51 // pred_check
          %p283 = pneg %p166
        $region54: #{tpu_custom_call.1} parent=51 // pred_check_branch
          %285 = sbr.rel (%p283) target = $region56
        $region55: #{tpu_custom_call.1} parent=51 // pred_region
          %286 = dma.done [#allocation3], 1024
        $region56: #{tpu_custom_call.1} parent=51 // pred_fallthru
          _
        // Predicated region
        $region57: #{tpu_custom_call.1} parent=51 // pred_check
          %p287 = pneg %p187
        $region58: #{tpu_custom_call.1} parent=51 // pred_check_branch
          %289 = sbr.rel (%p287) target = $region60
        $region59: #{tpu_custom_call.1} parent=51 // pred_region
          %290 = dma.done [#allocation6], 1024
        $region60: #{tpu_custom_call.1} parent=51 // pred_fallthru
          _
        %p291 = pneg %p40
        %p292 = pneg %p37
        %p293 = pneg %p61
        %p294 = pneg %p58
        %p295 = pneg %p82
        %p296 = pneg %p79
        %p297 = pneg %p103
        %p298 = pneg %p100
        %p299 = pneg %p124
        %p300 = pneg %p121
        %p301 = pneg %p145
        %p302 = pneg %p142
        %p303 = pneg %p166
        %p304 = pneg %p163
        %p305 = pneg %p187
        %p306 = pneg %p184
        %p307 = pneg %p213
        %p308 = pneg %p210
        %s309 = sand.u32 %s200, 1
        %s310 = scalar_lea.sflag [#allocation4], %s309
        %s311 = sand.u32 %s200, 1
        %s312 = smul.addr %s311, 8
        %s313 = scalar_lea.vmem [#allocation7], %s312
        %p315 = scmp.eq.s32.totalorder %s24, 0
        // Predicated region
        $region61: #{tpu_custom_call.1} parent=51 // pred_check
          %p316 = pneg %p315
        $region62: #{tpu_custom_call.1} parent=51 // pred_check_branch
          %318 = sbr.rel (%p316) target = $region64
        $region63: #{tpu_custom_call.1} parent=51 // pred_region
          %v319 = vld [vmem:[%s0] sm:$0xf]
          %v320 = vld [vmem:[%s0 + $0x4] sm:$0x3]
          %v321 = vld [vmem:[%s2] sm:$0xff]
          %v322 = vld [vmem:[%s3] sm:$0xff]
          %v323 = vld [vmem:[#allocation2] sm:$0xf]
          %v324 = vld [vmem:[#allocation2 + $0x4] sm:$0xf]
          %v325 = vld [vmem:[#allocation2 + $0x8] sm:$0xf]
          %v326 = vld [vmem:[#allocation2 + $0xc] sm:$0xf]
          %v327 = vld [vmem:[#allocation2 + $0x10] sm:$0xf]
          %v328 = vld [vmem:[#allocation2 + $0x14] sm:$0xf]
          %v329 = vld [vmem:[#allocation2 + $0x18] sm:$0xf]
          %v330 = vld [vmem:[#allocation2 + $0x1c] sm:$0xf]
          %v331 = vld [vmem:[#allocation2 + $0x20] sm:$0xf]
          %v332 = vld [vmem:[#allocation2 + $0x24] sm:$0xf]
          %v333 = vld [vmem:[#allocation2 + $0x28] sm:$0xf]
          %v334 = vld [vmem:[#allocation2 + $0x2c] sm:$0xf]
          %v335 = vld [vmem:[#allocation2 + $0x30] sm:$0xf]
          %v336 = vld [vmem:[#allocation2 + $0x34] sm:$0xf]
          %v337 = vld [vmem:[#allocation2 + $0x38] sm:$0xf]
          %v338 = vld [vmem:[#allocation2 + $0x3c] sm:$0xf]
          %v339 = vlaneseq
          %v340 = vand.u32 %v339, 127
          %341 = vset.pattern.permute.xlu0 0
          %342 = vperm.xlu0 %341, %v321
          %v343 = vpop.permute.xlu0 %342
          %vm344 = vcmp.ge.s32.totalorder %v340, %v343
          %v345 = vadd.s32 %v321, %v322
          %346 = vset.pattern.permute.xlu0 0
          %347 = vperm.xlu0 %346, %v345
          %v348 = vpop.permute.xlu0 %347
          %vm349 = vcmp.lt.s32.totalorder %v340, %v348
          %vm350 = vmand %vm344, %vm349
          %v351 = vsel %vm350, 1.0, 0.0
          %v352 = vpack.c.bf16 %v351, %v351
          %vm353 = vcmp.gt.s32.totalorder %v322, 0
          %v354 = vsel %vm353, 1.0, 0.0
          %v355 = vcvt.s32.f32 %v322
          %v356 = vmax.f32 %v355, 1.0
          %v357 = vrcp.pop %v356
          %v358 = vmul.f32 %v354, %v357
          %v361 = vunpack.c.l.b16 %v319
          %v362 = vunpack.c.l.b16 %v320
          %v363 = vpack.c.b16 %v362, %v361
          %vm364 = vcmask 97280
          %v366 = vsel %vm364, %v352, 0
          %vm368 = vcmask 1045504
          %v370 = vsel %vm368, %v363, 0
          %372 = vmatprep.subr.bf16.mxu0 0
          %373 = vmatpush1.bf16.msra.mxu0 0
          %374 = vmatprep.subr.bf16.mxu0 0
          %375 = vmatpush1.bf16.msra.mxu0 0
          %376 = vmatprep.subr.bf16.mxu0 0
          %377 = vmatpush1.bf16.msra.mxu0 0
          %378 = vmatprep.subr.bf16.mxu0 0
          %379 = vmatpush1.bf16.msra.mxu0 0
          %380 = vmatprep.subr.bf16.mxu0 0
          %381 = vmatpush1.bf16.msra.mxu0 0
          %382 = vmatprep.subr.bf16.mxu0 0
          %383 = vmatpush1.bf16.msra.mxu0 0
          %384 = vmatprep.subr.bf16.mxu0 0
          %385 = vmatpush1.bf16.msra.mxu0 0
          %386 = vmatprep.subr.bf16.mxu0 0
          %387 = vmatpush1.bf16.msra.mxu0 %v370
          %388 = vmatprep.subr.bf16.mxu0 0
          %389 = vmatpush2.bf16.msra.mxu0 0
          %390 = vmatprep.subr.bf16.mxu0 0
          %391 = vmatpush2.bf16.msra.mxu0 0
          %392 = vmatprep.subr.bf16.mxu0 0
          %393 = vmatpush2.bf16.msra.mxu0 0
          %394 = vmatprep.subr.bf16.mxu0 0
          %395 = vmatpush2.bf16.msra.mxu0 0
          %396 = vmatprep.subr.bf16.mxu0 0
          %397 = vmatpush2.bf16.msra.mxu0 0
          %398 = vmatprep.subr.bf16.mxu0 0
          %399 = vmatpush2.bf16.msra.mxu0 0
          %400 = vmatprep.subr.bf16.mxu0 0
          %401 = vmatpush2.bf16.msra.mxu0 0
          %402 = vmatprep.subr.bf16.mxu0 0
          %403 = vmatpush2.bf16.msra.mxu0 0
          %404 = vmatprep.mubr.bf16.mxu0 0
          %405 = vmatmul.mubr.bf16.gmra.mxu0 %v366
          %v406 = vpop.f32.mrf.mxu0
          %v407 = vadd.f32 0.0, %v406
          %v408 = vpop.f32.mrf.mxu0
          %v409 = vpop.f32.mrf.mxu0
          %v410 = vpop.f32.mrf.mxu0
          %411 = vdwg.mxu0
          %413 = vset.pattern.permute.xlu0 0
          %414 = vperm.xlu0 %413, %v358
          %v415 = vpop.permute.xlu0 %414
          %v417 = vmul.f32 %v407, %v415
          %v418 = vpack.c.bf16 %v417, %v417
          %v435 = vunpack.c.l.b16 %v323
          %v436 = vunpack.c.l.b16 %v324
          %v437 = vunpack.c.l.b16 %v325
          %v438 = vunpack.c.l.b16 %v326
          %v439 = vunpack.c.l.b16 %v327
          %v440 = vunpack.c.l.b16 %v328
          %v441 = vunpack.c.l.b16 %v329
          %v442 = vunpack.c.l.b16 %v330
          %v443 = vunpack.c.l.b16 %v331
          %v444 = vunpack.c.l.b16 %v332
          %v445 = vunpack.c.l.b16 %v333
          %v446 = vunpack.c.l.b16 %v334
          %v447 = vunpack.c.l.b16 %v335
          %v448 = vunpack.c.l.b16 %v336
          %v449 = vunpack.c.l.b16 %v337
          %v450 = vunpack.c.l.b16 %v338
          %v451 = vpack.c.b16 %v436, %v435
          %v452 = vpack.c.b16 %v438, %v437
          %v453 = vpack.c.b16 %v440, %v439
          %v454 = vpack.c.b16 %v442, %v441
          %v455 = vpack.c.b16 %v444, %v443
          %v456 = vpack.c.b16 %v446, %v445
          %v457 = vpack.c.b16 %v448, %v447
          %v458 = vpack.c.b16 %v450, %v449
          %467 = vmatprep.subr.bf16.mxu0 0
          %468 = vmatpush1.bf16.msra.mxu0 %v458
          %469 = vmatprep.subr.bf16.mxu0 0
          %470 = vmatpush1.bf16.msra.mxu0 %v457
          %471 = vmatprep.subr.bf16.mxu0 0
          %472 = vmatpush1.bf16.msra.mxu0 %v456
          %473 = vmatprep.subr.bf16.mxu0 0
          %474 = vmatpush1.bf16.msra.mxu0 %v455
          %475 = vmatprep.subr.bf16.mxu0 0
          %476 = vmatpush1.bf16.msra.mxu0 %v454
          %477 = vmatprep.subr.bf16.mxu0 0
          %478 = vmatpush1.bf16.msra.mxu0 %v453
          %479 = vmatprep.subr.bf16.mxu0 0
          %480 = vmatpush1.bf16.msra.mxu0 %v452
          %481 = vmatprep.subr.bf16.mxu0 0
          %482 = vmatpush1.bf16.msra.mxu0 %v451
          %483 = vmatprep.subr.bf16.mxu0 0
          %484 = vmatpush2.bf16.msra.mxu0 0
          %485 = vmatprep.subr.bf16.mxu0 0
          %486 = vmatpush2.bf16.msra.mxu0 0
          %487 = vmatprep.subr.bf16.mxu0 0
          %488 = vmatpush2.bf16.msra.mxu0 0
          %489 = vmatprep.subr.bf16.mxu0 0
          %490 = vmatpush2.bf16.msra.mxu0 0
          %491 = vmatprep.subr.bf16.mxu0 0
          %492 = vmatpush2.bf16.msra.mxu0 0
          %493 = vmatprep.subr.bf16.mxu0 0
          %494 = vmatpush2.bf16.msra.mxu0 0
          %495 = vmatprep.subr.bf16.mxu0 0
          %496 = vmatpush2.bf16.msra.mxu0 0
          %497 = vmatprep.subr.bf16.mxu0 0
          %498 = vmatpush2.bf16.msra.mxu0 0
          %499 = vmatprep.mubr.bf16.mxu0 0
          %500 = vmatmul.mubr.bf16.gmra.mxu0 %v418
          %v501 = vpop.f32.mrf.mxu0
          %v502 = vadd.f32 0.0, %v501
          %v503 = vpop.f32.mrf.mxu0
          %v504 = vpop.f32.mrf.mxu0
          %v505 = vpop.f32.mrf.mxu0
          %506 = vdwg.mxu0
          %v507 = vmax.f32 %v502, 0.0
          %v508 = vpack.c.bf16 %v507, %v507
          %510 = vmatprep.subr.bf16.mxu0 0
          %511 = vmatpush1.bf16.xpose.msra.mxu0 0
          %512 = vmatprep.subr.bf16.mxu0 0
          %513 = vmatpush1.bf16.xpose.msra.mxu0 0
          %514 = vmatprep.subr.bf16.mxu0 0
          %515 = vmatpush1.bf16.xpose.msra.mxu0 0
          %516 = vmatprep.subr.bf16.mxu0 0
          %517 = vmatpush1.bf16.xpose.msra.mxu0 0
          %518 = vmatprep.subr.bf16.mxu0 0
          %519 = vmatpush1.bf16.xpose.msra.mxu0 0
          %520 = vmatprep.subr.bf16.mxu0 0
          %521 = vmatpush1.bf16.xpose.msra.mxu0 0
          %522 = vmatprep.subr.bf16.mxu0 0
          %523 = vmatpush1.bf16.xpose.msra.mxu0 0
          %524 = vmatprep.subr.bf16.mxu0 0
          %525 = vmatpush1.bf16.xpose.msra.mxu0 %v363
          %526 = vmatprep.subr.bf16.mxu0 0
          %527 = vmatpush2.bf16.xpose.msra.mxu0 0
          %528 = vmatprep.subr.bf16.mxu0 0
          %529 = vmatpush2.bf16.xpose.msra.mxu0 0
          %530 = vmatprep.subr.bf16.mxu0 0
          %531 = vmatpush2.bf16.xpose.msra.mxu0 0
          %532 = vmatprep.subr.bf16.mxu0 0
          %533 = vmatpush2.bf16.xpose.msra.mxu0 0
          %534 = vmatprep.subr.bf16.mxu0 0
          %535 = vmatpush2.bf16.xpose.msra.mxu0 0
          %536 = vmatprep.subr.bf16.mxu0 0
          %537 = vmatpush2.bf16.xpose.msra.mxu0 0
          %538 = vmatprep.subr.bf16.mxu0 0
          %539 = vmatpush2.bf16.xpose.msra.mxu0 0
          %540 = vmatprep.subr.bf16.mxu0 0
          %541 = vmatpush2.bf16.xpose.msra.mxu0 0
          %542 = vmatprep.mubr.bf16.mxu0 0
          %543 = vmatmul.mubr.bf16.gmra.mxu0 %v508
          %v544 = vpop.f32.mrf.mxu0
          %v545 = vadd.f32 0.0, %v544
          %v546 = vpop.f32.mrf.mxu0
          %v547 = vpop.f32.mrf.mxu0
          %v548 = vpop.f32.mrf.mxu0
          %549 = vdwg.mxu0
          %v550 = vxor.u32 %v545, 2147483648
          %v551 = vmul.f32 %v550, 1.442695
          %v552 = vpow.pop %v551
          %v553 = vadd.f32 %v552, 1.0
          %v554 = vrcp.pop %v553
          %v555 = vmul.f32 1.0, %v554
          %v556 = vmul.f32 %v351, %v555
          %v557 = vpack.c.bf16 %v556, %v556
          %v559 = vsel %vm364, %v557, 0
          %561 = vmatprep.subr.bf16.mxu0 0
          %562 = vmatpush1.bf16.msra.mxu0 0
          %563 = vmatprep.subr.bf16.mxu0 0
          %564 = vmatpush1.bf16.msra.mxu0 0
          %565 = vmatprep.subr.bf16.mxu0 0
          %566 = vmatpush1.bf16.msra.mxu0 0
          %567 = vmatprep.subr.bf16.mxu0 0
          %568 = vmatpush1.bf16.msra.mxu0 0
          %569 = vmatprep.subr.bf16.mxu0 0
          %570 = vmatpush1.bf16.msra.mxu0 0
          %571 = vmatprep.subr.bf16.mxu0 0
          %572 = vmatpush1.bf16.msra.mxu0 0
          %573 = vmatprep.subr.bf16.mxu0 0
          %574 = vmatpush1.bf16.msra.mxu0 0
          %575 = vmatprep.subr.bf16.mxu0 0
          %576 = vmatpush1.bf16.msra.mxu0 %v370
          %577 = vmatprep.subr.bf16.mxu0 0
          %578 = vmatpush2.bf16.msra.mxu0 0
          %579 = vmatprep.subr.bf16.mxu0 0
          %580 = vmatpush2.bf16.msra.mxu0 0
          %581 = vmatprep.subr.bf16.mxu0 0
          %582 = vmatpush2.bf16.msra.mxu0 0
          %583 = vmatprep.subr.bf16.mxu0 0
          %584 = vmatpush2.bf16.msra.mxu0 0
          %585 = vmatprep.subr.bf16.mxu0 0
          %586 = vmatpush2.bf16.msra.mxu0 0
          %587 = vmatprep.subr.bf16.mxu0 0
          %588 = vmatpush2.bf16.msra.mxu0 0
          %589 = vmatprep.subr.bf16.mxu0 0
          %590 = vmatpush2.bf16.msra.mxu0 0
          %591 = vmatprep.subr.bf16.mxu0 0
          %592 = vmatpush2.bf16.msra.mxu0 0
          %593 = vmatprep.mubr.bf16.mxu0 0
          %594 = vmatmul.mubr.bf16.gmra.mxu0 %v559
          %v595 = vpop.f32.mrf.mxu0
          %v596 = vadd.f32 0.0, %v595
          %v597 = vpop.f32.mrf.mxu0
          %v598 = vpop.f32.mrf.mxu0
          %v599 = vpop.f32.mrf.mxu0
          %600 = vdwg.mxu0
          %v601 = vmul.f32 %v596, %v415
          %602 = vst [vmem:[%s313] sm:$0xff] %v601
        $region64: #{tpu_custom_call.1} parent=51 // pred_fallthru
          _
        %p603 = scmp.eq.s32.totalorder %s24, 1
        // Predicated region
        $region65: #{tpu_custom_call.1} parent=51 // pred_check
          %p604 = pneg %p603
        $region66: #{tpu_custom_call.1} parent=51 // pred_check_branch
          %606 = sbr.rel (%p604) target = $region68
        $region67: #{tpu_custom_call.1} parent=51 // pred_region
          %v607 = vld [vmem:[%s1] sm:$0xf]
          %v608 = vld [vmem:[%s4] sm:$0xff]
          %v609 = vld [vmem:[%s5] sm:$0xff]
          %v610 = vld [vmem:[#allocation5] sm:$0xf]
          %v611 = vld [vmem:[#allocation5 + $0x4] sm:$0xf]
          %v612 = vld [vmem:[#allocation5 + $0x8] sm:$0xf]
          %v613 = vld [vmem:[#allocation5 + $0xc] sm:$0xf]
          %v614 = vld [vmem:[#allocation5 + $0x10] sm:$0xf]
          %v615 = vld [vmem:[#allocation5 + $0x14] sm:$0xf]
          %v616 = vld [vmem:[#allocation5 + $0x18] sm:$0xf]
          %v617 = vld [vmem:[#allocation5 + $0x1c] sm:$0xf]
          %v618 = vld [vmem:[#allocation5 + $0x20] sm:$0xf]
          %v619 = vld [vmem:[#allocation5 + $0x24] sm:$0xf]
          %v620 = vld [vmem:[#allocation5 + $0x28] sm:$0xf]
          %v621 = vld [vmem:[#allocation5 + $0x2c] sm:$0xf]
          %v622 = vld [vmem:[#allocation5 + $0x30] sm:$0xf]
          %v623 = vld [vmem:[#allocation5 + $0x34] sm:$0xf]
          %v624 = vld [vmem:[#allocation5 + $0x38] sm:$0xf]
          %v625 = vld [vmem:[#allocation5 + $0x3c] sm:$0xf]
          %v626 = vlaneseq
          %v627 = vand.u32 %v626, 127
          %628 = vset.pattern.permute.xlu0 0
          %629 = vperm.xlu0 %628, %v608
          %v630 = vpop.permute.xlu0 %629
          %vm631 = vcmp.ge.s32.totalorder %v627, %v630
          %v632 = vadd.s32 %v608, %v609
          %633 = vset.pattern.permute.xlu0 0
          %634 = vperm.xlu0 %633, %v632
          %v635 = vpop.permute.xlu0 %634
          %vm636 = vcmp.lt.s32.totalorder %v627, %v635
          %vm637 = vmand %vm631, %vm636
          %v638 = vsel %vm637, 1.0, 0.0
          %v639 = vpack.c.bf16 %v638, %v638
          %vm640 = vcmp.gt.s32.totalorder %v609, 0
          %v641 = vsel %vm640, 1.0, 0.0
          %v642 = vcvt.s32.f32 %v609
          %v643 = vmax.f32 %v642, 1.0
          %v644 = vrcp.pop %v643
          %v645 = vmul.f32 %v641, %v644
          %vm646 = vcmask 56320
          %v648 = vsel %vm646, %v639, 0
          %vm650 = vcmask 1042432
          %vm651 = vcmask 1043456
          %v652 = vsel %vm650, 4294967295, 65535
          %v653 = vsel %vm651, %v652, 0
          %v655 = vand.u32 %v607, %v653
          %657 = vmatprep.subr.bf16.mxu0 0
          %658 = vmatpush1.bf16.msra.mxu0 0
          %659 = vmatprep.subr.bf16.mxu0 0
          %660 = vmatpush1.bf16.msra.mxu0 0
          %661 = vmatprep.subr.bf16.mxu0 0
          %662 = vmatpush1.bf16.msra.mxu0 0
          %663 = vmatprep.subr.bf16.mxu0 0
          %664 = vmatpush1.bf16.msra.mxu0 0
          %665 = vmatprep.subr.bf16.mxu0 0
          %666 = vmatpush1.bf16.msra.mxu0 0
          %667 = vmatprep.subr.bf16.mxu0 0
          %668 = vmatpush1.bf16.msra.mxu0 0
          %669 = vmatprep.subr.bf16.mxu0 0
          %670 = vmatpush1.bf16.msra.mxu0 0
          %671 = vmatprep.subr.bf16.mxu0 0
          %672 = vmatpush1.bf16.msra.mxu0 %v655
          %673 = vmatprep.subr.bf16.mxu0 0
          %674 = vmatpush2.bf16.msra.mxu0 0
          %675 = vmatprep.subr.bf16.mxu0 0
          %676 = vmatpush2.bf16.msra.mxu0 0
          %677 = vmatprep.subr.bf16.mxu0 0
          %678 = vmatpush2.bf16.msra.mxu0 0
          %679 = vmatprep.subr.bf16.mxu0 0
          %680 = vmatpush2.bf16.msra.mxu0 0
          %681 = vmatprep.subr.bf16.mxu0 0
          %682 = vmatpush2.bf16.msra.mxu0 0
          %683 = vmatprep.subr.bf16.mxu0 0
          %684 = vmatpush2.bf16.msra.mxu0 0
          %685 = vmatprep.subr.bf16.mxu0 0
          %686 = vmatpush2.bf16.msra.mxu0 0
          %687 = vmatprep.subr.bf16.mxu0 0
          %688 = vmatpush2.bf16.msra.mxu0 0
          %689 = vmatprep.mubr.bf16.mxu0 0
          %690 = vmatmul.mubr.bf16.gmra.mxu0 %v648
          %v691 = vpop.f32.mrf.mxu0
          %v692 = vadd.f32 0.0, %v691
          %v693 = vpop.f32.mrf.mxu0
          %v694 = vpop.f32.mrf.mxu0
          %v695 = vpop.f32.mrf.mxu0
          %696 = vdwg.mxu0
          %698 = vset.pattern.permute.xlu0 0
          %699 = vperm.xlu0 %698, %v645
          %v700 = vpop.permute.xlu0 %699
          %v702 = vmul.f32 %v692, %v700
          %v703 = vpack.c.bf16 %v702, %v702
          %v720 = vunpack.c.l.b16 %v610
          %v721 = vunpack.c.l.b16 %v611
          %v722 = vunpack.c.l.b16 %v612
          %v723 = vunpack.c.l.b16 %v613
          %v724 = vunpack.c.l.b16 %v614
          %v725 = vunpack.c.l.b16 %v615
          %v726 = vunpack.c.l.b16 %v616
          %v727 = vunpack.c.l.b16 %v617
          %v728 = vunpack.c.l.b16 %v618
          %v729 = vunpack.c.l.b16 %v619
          %v730 = vunpack.c.l.b16 %v620
          %v731 = vunpack.c.l.b16 %v621
          %v732 = vunpack.c.l.b16 %v622
          %v733 = vunpack.c.l.b16 %v623
          %v734 = vunpack.c.l.b16 %v624
          %v735 = vunpack.c.l.b16 %v625
          %v736 = vpack.c.b16 %v721, %v720
          %v737 = vpack.c.b16 %v723, %v722
          %v738 = vpack.c.b16 %v725, %v724
          %v739 = vpack.c.b16 %v727, %v726
          %v740 = vpack.c.b16 %v729, %v728
          %v741 = vpack.c.b16 %v731, %v730
          %v742 = vpack.c.b16 %v733, %v732
          %v743 = vpack.c.b16 %v735, %v734
          %752 = vmatprep.subr.bf16.mxu0 0
          %753 = vmatpush1.bf16.msra.mxu0 %v743
          %754 = vmatprep.subr.bf16.mxu0 0
          %755 = vmatpush1.bf16.msra.mxu0 %v742
          %756 = vmatprep.subr.bf16.mxu0 0
          %757 = vmatpush1.bf16.msra.mxu0 %v741
          %758 = vmatprep.subr.bf16.mxu0 0
          %759 = vmatpush1.bf16.msra.mxu0 %v740
          %760 = vmatprep.subr.bf16.mxu0 0
          %761 = vmatpush1.bf16.msra.mxu0 %v739
          %762 = vmatprep.subr.bf16.mxu0 0
          %763 = vmatpush1.bf16.msra.mxu0 %v738
          %764 = vmatprep.subr.bf16.mxu0 0
          %765 = vmatpush1.bf16.msra.mxu0 %v737
          %766 = vmatprep.subr.bf16.mxu0 0
          %767 = vmatpush1.bf16.msra.mxu0 %v736
          %768 = vmatprep.subr.bf16.mxu0 0
          %769 = vmatpush2.bf16.msra.mxu0 0
          %770 = vmatprep.subr.bf16.mxu0 0
          %771 = vmatpush2.bf16.msra.mxu0 0
          %772 = vmatprep.subr.bf16.mxu0 0
          %773 = vmatpush2.bf16.msra.mxu0 0
          %774 = vmatprep.subr.bf16.mxu0 0
          %775 = vmatpush2.bf16.msra.mxu0 0
          %776 = vmatprep.subr.bf16.mxu0 0
          %777 = vmatpush2.bf16.msra.mxu0 0
          %778 = vmatprep.subr.bf16.mxu0 0
          %779 = vmatpush2.bf16.msra.mxu0 0
          %780 = vmatprep.subr.bf16.mxu0 0
          %781 = vmatpush2.bf16.msra.mxu0 0
          %782 = vmatprep.subr.bf16.mxu0 0
          %783 = vmatpush2.bf16.msra.mxu0 0
          %784 = vmatprep.mubr.bf16.mxu0 0
          %785 = vmatmul.mubr.bf16.gmra.mxu0 %v703
          %v786 = vpop.f32.mrf.mxu0
          %v787 = vadd.f32 0.0, %v786
          %v788 = vpop.f32.mrf.mxu0
          %v789 = vpop.f32.mrf.mxu0
          %v790 = vpop.f32.mrf.mxu0
          %791 = vdwg.mxu0
          %v792 = vmax.f32 %v787, 0.0
          %v793 = vpack.c.bf16 %v792, %v792
          %794 = vmatprep.subr.bf16.mxu0 0
          %795 = vmatpush1.bf16.xpose.msra.mxu0 0
          %796 = vmatprep.subr.bf16.mxu0 0
          %797 = vmatpush1.bf16.xpose.msra.mxu0 0
          %798 = vmatprep.subr.bf16.mxu0 0
          %799 = vmatpush1.bf16.xpose.msra.mxu0 0
          %800 = vmatprep.subr.bf16.mxu0 0
          %801 = vmatpush1.bf16.xpose.msra.mxu0 0
          %802 = vmatprep.subr.bf16.mxu0 0
          %803 = vmatpush1.bf16.xpose.msra.mxu0 0
          %804 = vmatprep.subr.bf16.mxu0 0
          %805 = vmatpush1.bf16.xpose.msra.mxu0 0
          %806 = vmatprep.subr.bf16.mxu0 0
          %807 = vmatpush1.bf16.xpose.msra.mxu0 0
          %808 = vmatprep.subr.bf16.mxu0 0
          %809 = vmatpush1.bf16.xpose.msra.mxu0 %v607
          %810 = vmatprep.subr.bf16.mxu0 0
          %811 = vmatpush2.bf16.xpose.msra.mxu0 0
          %812 = vmatprep.subr.bf16.mxu0 0
          %813 = vmatpush2.bf16.xpose.msra.mxu0 0
          %814 = vmatprep.subr.bf16.mxu0 0
          %815 = vmatpush2.bf16.xpose.msra.mxu0 0
          %816 = vmatprep.subr.bf16.mxu0 0
          %817 = vmatpush2.bf16.xpose.msra.mxu0 0
          %818 = vmatprep.subr.bf16.mxu0 0
          %819 = vmatpush2.bf16.xpose.msra.mxu0 0
          %820 = vmatprep.subr.bf16.mxu0 0
          %821 = vmatpush2.bf16.xpose.msra.mxu0 0
          %822 = vmatprep.subr.bf16.mxu0 0
          %823 = vmatpush2.bf16.xpose.msra.mxu0 0
          %824 = vmatprep.subr.bf16.mxu0 0
          %825 = vmatpush2.bf16.xpose.msra.mxu0 0
          %826 = vmatprep.mubr.bf16.mxu0 0
          %827 = vmatmul.mubr.bf16.gmra.mxu0 %v793
          %v828 = vpop.f32.mrf.mxu0
          %v829 = vadd.f32 0.0, %v828
          %v830 = vpop.f32.mrf.mxu0
          %v831 = vpop.f32.mrf.mxu0
          %v832 = vpop.f32.mrf.mxu0
          %833 = vdwg.mxu0
          %v834 = vxor.u32 %v829, 2147483648
          %v835 = vmul.f32 %v834, 1.442695
          %v836 = vpow.pop %v835
          %v837 = vadd.f32 %v836, 1.0
          %v838 = vrcp.pop %v837
          %v839 = vmul.f32 1.0, %v838
          %v840 = vmul.f32 %v638, %v839
          %v841 = vpack.c.bf16 %v840, %v840
          %v843 = vsel %vm646, %v841, 0
          %845 = vmatprep.subr.bf16.mxu0 0
          %846 = vmatpush1.bf16.msra.mxu0 0
          %847 = vmatprep.subr.bf16.mxu0 0
          %848 = vmatpush1.bf16.msra.mxu0 0
          %849 = vmatprep.subr.bf16.mxu0 0
          %850 = vmatpush1.bf16.msra.mxu0 0
          %851 = vmatprep.subr.bf16.mxu0 0
          %852 = vmatpush1.bf16.msra.mxu0 0
          %853 = vmatprep.subr.bf16.mxu0 0
          %854 = vmatpush1.bf16.msra.mxu0 0
          %855 = vmatprep.subr.bf16.mxu0 0
          %856 = vmatpush1.bf16.msra.mxu0 0
          %857 = vmatprep.subr.bf16.mxu0 0
          %858 = vmatpush1.bf16.msra.mxu0 0
          %859 = vmatprep.subr.bf16.mxu0 0
          %860 = vmatpush1.bf16.msra.mxu0 %v655
          %861 = vmatprep.subr.bf16.mxu0 0
          %862 = vmatpush2.bf16.msra.mxu0 0
          %863 = vmatprep.subr.bf16.mxu0 0
          %864 = vmatpush2.bf16.msra.mxu0 0
          %865 = vmatprep.subr.bf16.mxu0 0
          %866 = vmatpush2.bf16.msra.mxu0 0
          %867 = vmatprep.subr.bf16.mxu0 0
          %868 = vmatpush2.bf16.msra.mxu0 0
          %869 = vmatprep.subr.bf16.mxu0 0
          %870 = vmatpush2.bf16.msra.mxu0 0
          %871 = vmatprep.subr.bf16.mxu0 0
          %872 = vmatpush2.bf16.msra.mxu0 0
          %873 = vmatprep.subr.bf16.mxu0 0
          %874 = vmatpush2.bf16.msra.mxu0 0
          %875 = vmatprep.subr.bf16.mxu0 0
          %876 = vmatpush2.bf16.msra.mxu0 0
          %877 = vmatprep.mubr.bf16.mxu0 0
          %878 = vmatmul.mubr.bf16.gmra.mxu0 %v843
          %v879 = vpop.f32.mrf.mxu0
          %v880 = vadd.f32 0.0, %v879
          %v881 = vpop.f32.mrf.mxu0
          %v882 = vpop.f32.mrf.mxu0
          %v883 = vpop.f32.mrf.mxu0
          %884 = vdwg.mxu0
          %v885 = vmul.f32 %v880, %v700
          %886 = vst [vmem:[%s313] sm:$0xff] %v885
        $region68: #{tpu_custom_call.1} parent=51 // pred_fallthru
          _
        %s887 = sand.u32 %s200, 1
        %s888 = scalar_lea.sflag [#allocation4], %s887
        %s889 = sand.u32 %s200, 1
        %s890 = smul.addr %s889, 8
        %s891 = scalar_lea.vmem [#allocation7], %s890
        // Predicated region
        $region69: #{tpu_custom_call.1} parent=51 // pred_check
          %p892 = pneg %p210
        $region70: #{tpu_custom_call.1} parent=51 // pred_check_branch
          %894 = sbr.rel (%p892) target = $region72
        $region71: #{tpu_custom_call.1} parent=51 // pred_region
          %s896 = ssub.s32 128, 128
          %897 = vsyncadd %s888, %s896
          %s898 = smul.addr %s24, 128
          %s899 = scalar_lea.hbm %s8, %s898
          %s901 = sshll.u32 %s891, 4
          %s902 = int_to_ptr.vmem [resolvable:$true] %s901
          %904 = dma.vmem_to_hbm [thread:$0]  %s902, 128, %s899, %s888
        $region72: #{tpu_custom_call.1} parent=51 // pred_fallthru
          _
      $region52: #{tpu_custom_call.1} parent=5 // pred_fallthru
        _
      %p905 = scmp.le.s32.totalorder 2, %s19
      // Predicated region
      $region73: #{tpu_custom_call.1} parent=5 // pred_check
        %p906 = pneg %p905
      $region74: #{tpu_custom_call.1} parent=5 // pred_check_branch
        %908 = sbr.rel (%p906) target = $region76
      $region75: #{tpu_custom_call.1} parent=5 // pred_region
        %s909 = ssub.s32 %s19, 2
        // Predicated region
        $region77: #{tpu_custom_call.1} parent=75 // pred_check
          %p910 = pneg %p216
        $region78: #{tpu_custom_call.1} parent=75 // pred_check_branch
          %912 = sbr.rel (%p910) target = $region80
        $region79: #{tpu_custom_call.1} parent=75 // pred_region
          %s913 = sand.u32 %s201, 1
          %s914 = scalar_lea.sflag [#allocation4], %s913
          %s915 = sand.u32 %s201, 1
          %s916 = smul.addr %s915, 8
          %s917 = scalar_lea.vmem [#allocation7], %s916
          %918 = dma.done %s914, 128
        $region80: #{tpu_custom_call.1} parent=75 // pred_fallthru
          _
      $region76: #{tpu_custom_call.1} parent=5 // pred_fallthru
        _
    $region6: #{tpu_custom_call.1} parent=1 // loop_footer
      %s23 = sadd.s32 1, %s19
    $region7: #{tpu_custom_call.1} parent=1 // loop_footer_branch
      %18 = sbr.rel target = $region3
    $region8: #{tpu_custom_call.1} parent=1 // loop_exit
      _
    %919 = vsyncpa [#allocation3], 1
    %s920 = scalar_lea.sflag [#allocation3], 1
    %921 = vsyncpa %s920, 1
    %922 = vsyncpa [#allocation6], 1
    %923 = vsyncpa [#allocation4], 1
    %s924 = scalar_lea.sflag [#allocation4], 1
    %925 = vsyncpa %s924, 1

</llo_original>
